<compile_context>
chip_gen: v5e
topology: v5e:2x2
jax: 0.10.0
libtpu: 0.0.40
codegen_flags: <defaults>
</compile_context>

<pallas_src>
import jax
import jax.numpy as jnp
from jax.experimental import pallas as pl
from jax.experimental.pallas import tpu as pltpu


# ------------------------------ planning helpers ---------------------------- #

def _cdiv(a, b):
    return -(-a // b)


def _round_up(a, m):
    return _cdiv(a, m) * m


def _vmem_limit_bytes():
    """Generation-aware scoped-VMEM limit: ~5/8 of physical VMEM, capped 96 MiB.
    v5e/v6e (128 MiB) -> 80 MiB; v7x (64 MiB) -> 40 MiB; fallback 40 MiB."""
    try:
        cap = int(pltpu.get_tpu_info().vmem_capacity_bytes)
    except Exception:
        cap = 64 << 20
    return int(min(cap * 5 // 8, 96 << 20))


def _plan_tiles(hw_s, hw_t, c_in, c_out, tile_budget_bytes):
    """Shared HW-reduction tile count + per-input 128-multiple tile widths.

    The wrapper zero-pads each HW dim up to n*tile, so any spatial size works
    (no divisibility requirement) and loads stay lane-dense."""
    def max_tile(c):
        w = (tile_budget_bytes // (2 * c)) // 128 * 128      # bf16 stream
        return int(min(max(w, 512), 8192))
    n = max(_cdiv(hw_s, max_tile(c_in)), _cdiv(hw_t, max_tile(c_out)), 1)
    ts = _round_up(_cdiv(hw_s, n), 128)
    tt = _round_up(_cdiv(hw_t, n), 128)
    return n, ts, tt


# ------------------------------- Pallas kernel ------------------------------ #

def _stream_stats_kernel(xs_ref, xt_ref, gx_ref, rs_ref, gt_ref):
    # xs_ref: (1, Cin, ts)  bf16 student tile (zero-padded HW)
    # xt_ref: (1, Cout, tt) bf16 teacher tile (zero-padded HW)
    # gx_ref: (1, Cin, Cin)   f32  raw student Gram  X @ X^T   (output-resident acc)
    # rs_ref: (1, Cin, 1)     f32  row sums          X @ 1
    # gt_ref: (1, Cout, Cout) f32  teacher Gram      Ft @ Ft^T
    k = pl.program_id(1)

    @pl.when(k == 0)
    def _():
        gx_ref[...] = jnp.zeros_like(gx_ref)
        rs_ref[...] = jnp.zeros_like(rs_ref)
        gt_ref[...] = jnp.zeros_like(gt_ref)

    xs = xs_ref[0]
    xt = xt_ref[0]
    # X @ X^T: contract the lane (HW) dim of both operands — no transposed copy
    # in HBM; bf16 operands with f32 accumulation on the MXU.
    dn = (((1,), (1,)), ((), ()))
    gx_ref[...] += jax.lax.dot_general(
        xs, xs, dn, preferred_element_type=jnp.float32)[None]
    gt_ref[...] += jax.lax.dot_general(
        xt, xt, dn, preferred_element_type=jnp.float32)[None]
    rs_ref[...] += jnp.sum(xs.astype(jnp.float32), axis=1, keepdims=True)[None]


def stream_stats(fs_pad, ft_pad, n_k, ts, tt, vmem_limit):
    """Single HBM pass over both feature maps -> per-batch (Gx, rowsum, Gt)."""
    B, Cin, hw_s = fs_pad.shape
    Cout, hw_t = ft_pad.shape[1], ft_pad.shape[2]
    flops = 2 * B * (Cin * Cin * hw_s + Cout * Cout * hw_t) + 2 * B * Cin * hw_s
    bytes_accessed = (fs_pad.size * 2 + ft_pad.size * 2
                      + 4 * B * (Cin * Cin + Cin + Cout * Cout))
    # TODO(synk): on v7x with B == 1 only one TensorCore is busy; if that case
    # matters, shard the HW axis across cores with per-core partial Grams.
    return pl.pallas_call(
        _stream_stats_kernel,
        out_shape=(jax.ShapeDtypeStruct((B, Cin, Cin), jnp.float32),
                   jax.ShapeDtypeStruct((B, Cin, 1), jnp.float32),
                   jax.ShapeDtypeStruct((B, Cout, Cout), jnp.float32)),
        grid_spec=pltpu.PrefetchScalarGridSpec(
            num_scalar_prefetch=0,
            grid=(B, n_k),
            in_specs=[pl.BlockSpec((1, Cin, ts), lambda b, k: (b, 0, k)),
                      pl.BlockSpec((1, Cout, tt), lambda b, k: (b, 0, k))],
            out_specs=[pl.BlockSpec((1, Cin, Cin), lambda b, k: (b, 0, 0)),
                       pl.BlockSpec((1, Cin, 1), lambda b, k: (b, 0, 0)),
                       pl.BlockSpec((1, Cout, Cout), lambda b, k: (b, 0, 0))]),
        compiler_params=pltpu.CompilerParams(
            dimension_semantics=("parallel", "arbitrary"),
            vmem_limit_bytes=vmem_limit),
        cost_estimate=pl.CostEstimate(flops=flops, transcendentals=0,
                                      bytes_accessed=bytes_accessed),
    )(fs_pad, ft_pad)


# ------------------------------ tiny XLA epilogue --------------------------- #

def _ickd_loss_from_stats(gx, rs, gt, w, gamma, beta, hw_true, eps=1e-5):
    """Fold conv+BN into the student Gram from raw-feature statistics and
    compute the ICKD loss. All arrays here are O(B * Cout^2) — tiny."""
    B = gx.shape[0]
    Cout = w.shape[0]
    n_elems = B * hw_true

    wr = jnp.einsum("oc,bc->bo", w, rs[:, :, 0])          # (B, Cout)  = W r_b
    wgw = jnp.einsum("oc,bcd,pd->bop", w, gx, w)          # (B, Cout, Cout) = W Gx_b W^T

    mean = jnp.sum(wr, axis=0) / n_elems
    ex2 = jnp.sum(jnp.diagonal(wgw, axis1=1, axis2=2), axis=0) / n_elems
    var = jnp.maximum(ex2 - mean * mean, 0.0)             # clamp single-pass variance
    s = gamma / jnp.sqrt(var + eps)                       # BN scale
    t = beta - mean * s                                   # BN shift

    # G_ys^b = S (W Gx_b W^T) S + (s*Wr_b) t^T + t (s*Wr_b)^T + HW * t t^T
    swr = s[None, :] * wr
    gs = (s[None, :, None] * wgw * s[None, None, :]
          + swr[:, :, None] * t[None, None, :]
          + t[None, :, None] * swr[:, None, :]
          + hw_true * (t[:, None] * t[None, :])[None])

    def _row_normalize(g):
        # F.normalize(dim=2): x / max(||x||_2, 1e-12)  ==  x * rsqrt(max(||x||^2, 1e-24))
        inv = jax.lax.rsqrt(jnp.maximum(
            jnp.sum(g * g, axis=2, keepdims=True), 1e-24))
        return g * inv

    d = _row_normalize(gs) - _row_normalize(gt)
    return jnp.sum(d * d) / (Cout * B)


# -------------------------------- module glue -------------------------------- #

class ICKDLossPallas:
    """Pallas port of ICKDLoss. dim_in = cfg.ICKD.FEATDIM_S[1],
    dim_out = cfg.ICKD.FEATDIM_T[1]."""

    def __init__(self, dim_in, dim_out, key):
        k_s, k_t = jax.random.split(key)
        bound = 1.0 / (dim_in ** 0.5)
        # Conv2d(dim_in, dim_out, 1, bias=False) weight, squeezed to (Cout, Cin)
        self.w_s = jax.random.uniform(
            k_s, (dim_out, dim_in), jnp.float32, -bound, bound)
        # embed_t exists in the PyTorch module but is never applied in batch_loss;
        # initialized for parity, deliberately unused.
        self.w_t = jax.random.uniform(
            k_t, (dim_out, dim_in), jnp.float32, -bound, bound)
        # BatchNorm2d default affine init
        self.gamma_s = jnp.ones((dim_out,), jnp.float32)
        self.beta_s = jnp.zeros((dim_out,), jnp.float32)
        # TODO(synk): BN running-stats (momentum) buffer updates are not modeled;
        # only the training-mode forward with batch statistics is implemented.
        self._vmem_limit = _vmem_limit_bytes()
        self._tile_budget = max(1 << 20, self._vmem_limit // 16)

    def __call__(self, g_s, g_t):
        return [self.batch_loss(fs, ft) for fs, ft in zip(g_s, g_t)]

    def batch_loss(self, f_s, f_t):
        B, Cin, H, W = f_s.shape
        Cout = self.w_s.shape[0]
        HW = H * W
        fs_flat = f_s.reshape(B, Cin, HW)
        ft_flat = f_t.reshape(B, Cout, -1)                 # view(bsz, ch, -1)
        HWt = ft_flat.shape[2]

        n_k, ts, tt = _plan_tiles(HW, HWt, Cin, Cout, self._tile_budget)
        # bf16 streams + zero-padding to lane-dense tiles (neutral for Grams/sums).
        fs_pad = jnp.pad(fs_flat.astype(jnp.bfloat16),
                         ((0, 0), (0, 0), (0, n_k * ts - HW)))
        ft_pad = jnp.pad(ft_flat.astype(jnp.bfloat16),
                         ((0, 0), (0, 0), (0, n_k * tt - HWt)))

        gx, rs, gt = stream_stats(fs_pad, ft_pad, n_k, ts, tt, self._vmem_limit)
        return _ickd_loss_from_stats(gx, rs, gt, self.w_s,
                                     self.gamma_s, self.beta_s, HW)


# ----------------------------- pure-JAX reference --------------------------- #

def _reference_batch_loss(f_s, f_t, w_s, gamma, beta, eps=1e-5):
    B, Cin, H, W = f_s.shape
    Cout = w_s.shape[0]
    fs = jnp.einsum("oc,bchw->bohw", w_s, f_s)
    mean = jnp.mean(fs, axis=(0, 2, 3))
    var = jnp.mean((fs - mean[None, :, None, None]) ** 2, axis=(0, 2, 3))
    fs = (fs - mean[None, :, None, None]) / jnp.sqrt(var + eps)[None, :, None, None]
    fs = fs * gamma[None, :, None, None] + beta[None, :, None, None]
    fs = fs.reshape(B, Cout, -1)
    ft = f_t.reshape(B, Cout, -1)

    def norm_gram(x):
        g = jnp.einsum("bcd,bed->bce", x, x)
        n = jnp.maximum(jnp.linalg.norm(g, axis=2, keepdims=True), 1e-12)
        return g / n

    d = norm_gram(fs) - norm_gram(ft)
    return jnp.sum(d * d) / (Cout * B)


# ------------------------------------ main ----------------------------------- #

if __name__ == "__main__":
    key = jax.random.PRNGKey(0)
    k_params, k_s, k_t = jax.random.split(key, 3)

    B, Cin, Cout, H, W = 2, 8, 16, 16, 16   # FEATDIM_S[1]=8, FEATDIM_T[1]=16
    f_s = jax.random.normal(k_s, (B, Cin, H, W), jnp.float32)
    f_t = jax.random.normal(k_t, (B, Cout, H, W), jnp.float32)

    loss_mod = ICKDLossPallas(Cin, Cout, k_params)
    losses = loss_mod([f_s], [f_t])
    loss = jax.block_until_ready(losses[0])

    ref = _reference_batch_loss(
        f_s, f_t, loss_mod.w_s, loss_mod.gamma_s, loss_mod.beta_s)
    # bf16 input streams (Grams accumulated in f32) vs. pure-f32 reference.
    assert jnp.allclose(loss, ref, rtol=5e-2, atol=1e-3), (loss, ref)

    print("KERNEL_OK")
</pallas_src>

<mosaic_0001>
module attributes {stable_mosaic.version = 11 : i64} {
  func.func @_stream_stats_kernel(%arg0: i32, %arg1: i32, %arg2: memref<1x8x256xbf16, #tpu.memory_space<vmem>>, %arg3: memref<1x16x256xbf16, #tpu.memory_space<vmem>>, %arg4: memref<1x8x8xf32, #tpu.memory_space<vmem>>, %arg5: memref<1x8x1xf32, #tpu.memory_space<vmem>>, %arg6: memref<1x16x16xf32, #tpu.memory_space<vmem>>) attributes {dimension_semantics = [#tpu.dimension_semantics<parallel>, #tpu.dimension_semantics<arbitrary>], iteration_bounds = array<i64: 2, 1>, scalar_prefetch = 0 : i64, scratch_operands = 0 : i64, tpu.core_type = #tpu.core_type<tc>, window_params = [{transform_indices = @transform_0, window_bounds = array<i64: 1, 8, 256>}, {transform_indices = @transform_1, window_bounds = array<i64: 1, 16, 256>}, {transform_indices = @transform_2, window_bounds = array<i64: 1, 8, 8>}, {transform_indices = @transform_3, window_bounds = array<i64: 1, 8, 1>}, {transform_indices = @transform_4, window_bounds = array<i64: 1, 16, 16>}]} {
    %c0_i32 = arith.constant 0 : i32
    %0 = arith.cmpi eq, %arg1, %c0_i32 : i32
    %1 = arith.extui %0 : i1 to i32
    %c0_i32_0 = arith.constant 0 : i32
    %2 = arith.cmpi ne, %1, %c0_i32_0 : i32
    scf.if %2 {
      %cst_26 = arith.constant 0.000000e+00 : f32
      %24 = vector.broadcast %cst_26 : f32 to vector<1x8x8xf32>
      %c0_27 = arith.constant 0 : index
      %c0_28 = arith.constant 0 : index
      %c0_29 = arith.constant 0 : index
      %25 = vector.load %arg4[%c0_27, %c0_28, %c0_29] : memref<1x8x8xf32, #tpu.memory_space<vmem>>, vector<1x8x8xf32>
      tpu.vector_store %arg4[%c0_27, %c0_28, %c0_29], %24 {strides = array<i32>} : memref<1x8x8xf32, #tpu.memory_space<vmem>>, vector<1x8x8xf32>,
      %cst_30 = arith.constant 0.000000e+00 : f32
      %26 = vector.broadcast %cst_30 : f32 to vector<1x8x1xf32>
      %c0_31 = arith.constant 0 : index
      %c0_32 = arith.constant 0 : index
      %c0_33 = arith.constant 0 : index
      %27 = vector.load %arg5[%c0_31, %c0_32, %c0_33] : memref<1x8x1xf32, #tpu.memory_space<vmem>>, vector<1x8x1xf32>
      tpu.vector_store %arg5[%c0_31, %c0_32, %c0_33], %26 {strides = array<i32>} : memref<1x8x1xf32, #tpu.memory_space<vmem>>, vector<1x8x1xf32>,
      %cst_34 = arith.constant 0.000000e+00 : f32
      %28 = vector.broadcast %cst_34 : f32 to vector<1x16x16xf32>
      %c0_35 = arith.constant 0 : index
      %c0_36 = arith.constant 0 : index
      %c0_37 = arith.constant 0 : index
      %29 = vector.load %arg6[%c0_35, %c0_36, %c0_37] : memref<1x16x16xf32, #tpu.memory_space<vmem>>, vector<1x16x16xf32>
      tpu.vector_store %arg6[%c0_35, %c0_36, %c0_37], %28 {strides = array<i32>} : memref<1x16x16xf32, #tpu.memory_space<vmem>>, vector<1x16x16xf32>,
    } else {
    }
    %c0 = arith.constant 0 : index
    %c0_1 = arith.constant 0 : index
    %c0_2 = arith.constant 0 : index
    %3 = vector.load %arg2[%c0, %c0_1, %c0_2] : memref<1x8x256xbf16, #tpu.memory_space<vmem>>, vector<1x8x256xbf16>
    %4 = vector.shape_cast %3 : vector<1x8x256xbf16> to vector<8x256xbf16>
    %c0_3 = arith.constant 0 : index
    %c0_4 = arith.constant 0 : index
    %c0_5 = arith.constant 0 : index
    %5 = vector.load %arg3[%c0_3, %c0_4, %c0_5] : memref<1x16x256xbf16, #tpu.memory_space<vmem>>, vector<1x16x256xbf16>
    %6 = vector.shape_cast %5 : vector<1x16x256xbf16> to vector<16x256xbf16>
    %c0_6 = arith.constant 0 : index
    %c0_7 = arith.constant 0 : index
    %c0_8 = arith.constant 0 : index
    %7 = vector.load %arg4[%c0_6, %c0_7, %c0_8] : memref<1x8x8xf32, #tpu.memory_space<vmem>>, vector<1x8x8xf32>
    %cst = arith.constant dense<0.000000e+00> : vector<8x8xf32>
    %8 = tpu.matmul %4, %4, %cst {dimension_numbers = #tpu.dot_dimension_numbers<[1], [1], [0], [0], [0, 0, 1, 0], [], []>} : vector<8x256xbf16>, vector<8x256xbf16>, vector<8x8xf32> -> vector<8x8xf32>
    %9 = vector.shape_cast %8 : vector<8x8xf32> to vector<1x8x8xf32>
    %10 = arith.addf %7, %9 : vector<1x8x8xf32>
    %c0_9 = arith.constant 0 : index
    %c0_10 = arith.constant 0 : index
    %c0_11 = arith.constant 0 : index
    %11 = vector.load %arg4[%c0_9, %c0_10, %c0_11] : memref<1x8x8xf32, #tpu.memory_space<vmem>>, vector<1x8x8xf32>
    tpu.vector_store %arg4[%c0_9, %c0_10, %c0_11], %10 {strides = array<i32>} : memref<1x8x8xf32, #tpu.memory_space<vmem>>, vector<1x8x8xf32>,
    %c0_12 = arith.constant 0 : index
    %c0_13 = arith.constant 0 : index
    %c0_14 = arith.constant 0 : index
    %12 = vector.load %arg6[%c0_12, %c0_13, %c0_14] : memref<1x16x16xf32, #tpu.memory_space<vmem>>, vector<1x16x16xf32>
    %cst_15 = arith.constant dense<0.000000e+00> : vector<16x16xf32>
    %13 = tpu.matmul %6, %6, %cst_15 {dimension_numbers = #tpu.dot_dimension_numbers<[1], [1], [0], [0], [0, 0, 1, 0], [], []>} : vector<16x256xbf16>, vector<16x256xbf16>, vector<16x16xf32> -> vector<16x16xf32>
    %14 = vector.shape_cast %13 : vector<16x16xf32> to vector<1x16x16xf32>
    %15 = arith.addf %12, %14 : vector<1x16x16xf32>
    %c0_16 = arith.constant 0 : index
    %c0_17 = arith.constant 0 : index
    %c0_18 = arith.constant 0 : index
    %16 = vector.load %arg6[%c0_16, %c0_17, %c0_18] : memref<1x16x16xf32, #tpu.memory_space<vmem>>, vector<1x16x16xf32>
    tpu.vector_store %arg6[%c0_16, %c0_17, %c0_18], %15 {strides = array<i32>} : memref<1x16x16xf32, #tpu.memory_space<vmem>>, vector<1x16x16xf32>,
    %c0_19 = arith.constant 0 : index
    %c0_20 = arith.constant 0 : index
    %c0_21 = arith.constant 0 : index
    %17 = vector.load %arg5[%c0_19, %c0_20, %c0_21] : memref<1x8x1xf32, #tpu.memory_space<vmem>>, vector<1x8x1xf32>
    %18 = arith.extf %4 : vector<8x256xbf16> to vector<8x256xf32>
    %cst_22 = arith.constant dense<0.000000e+00> : vector<8xf32>
    %19 = vector.multi_reduction <add>, %18, %cst_22 [1] : vector<8x256xf32> to vector<8xf32>
    %20 = vector.shape_cast %19 : vector<8xf32> to vector<8x1xf32>
    %21 = vector.shape_cast %20 : vector<8x1xf32> to vector<1x8x1xf32>
    %22 = arith.addf %17, %21 : vector<1x8x1xf32>
    %c0_23 = arith.constant 0 : index
    %c0_24 = arith.constant 0 : index
    %c0_25 = arith.constant 0 : index
    %23 = vector.load %arg5[%c0_23, %c0_24, %c0_25] : memref<1x8x1xf32, #tpu.memory_space<vmem>>, vector<1x8x1xf32>
    tpu.vector_store %arg5[%c0_23, %c0_24, %c0_25], %22 {strides = array<i32>} : memref<1x8x1xf32, #tpu.memory_space<vmem>>, vector<1x8x1xf32>,
    return
  }
  func.func @transform_0(%arg0: i32, %arg1: i32) -> (i32, i32, i32) {
    %c0_i32 = arith.constant 0 : i32
    %c0_i32_0 = arith.constant 0 : i32
    return %arg0, %c0_i32, %arg1 : i32, i32, i32
  }
  func.func @transform_1(%arg0: i32, %arg1: i32) -> (i32, i32, i32) {
    %c0_i32 = arith.constant 0 : i32
    %c0_i32_0 = arith.constant 0 : i32
    return %arg0, %c0_i32, %arg1 : i32, i32, i32
  }
  func.func @transform_2(%arg0: i32, %arg1: i32) -> (i32, i32, i32) {
    %c0_i32 = arith.constant 0 : i32
    %c0_i32_0 = arith.constant 0 : i32
    %c0_i32_1 = arith.constant 0 : i32
    return %arg0, %c0_i32, %c0_i32_0 : i32, i32, i32
  }
  func.func @transform_3(%arg0: i32, %arg1: i32) -> (i32, i32, i32) {
    %c0_i32 = arith.constant 0 : i32
    %c0_i32_0 = arith.constant 0 : i32
    %c0_i32_1 = arith.constant 0 : i32
    return %arg0, %c0_i32, %c0_i32_0 : i32, i32, i32
  }
  func.func @transform_4(%arg0: i32, %arg1: i32) -> (i32, i32, i32) {
    %c0_i32 = arith.constant 0 : i32
    %c0_i32_0 = arith.constant 0 : i32
    %c0_i32_1 = arith.constant 0 : i32
    return %arg0, %c0_i32, %c0_i32_0 : i32, i32, i32
  }
}

</mosaic_0001>

<llo_original>
// kernel: tpu_custom_call.1
$region0: #{tpu_custom_call.1}
  #allocation0 [shape = 'u32[]', space=smem, size = 0x4, offset = 0x4, fixed_abs, tag = 'smem constant byte address 0x4 - core index']
  #allocation1 [shape = 'u32[72,128]{1,0:T(1,128)}', space=vmem, size = 0x9000, scoped, tag = 'internal scratch']
  %s0 = inlined_call_operand.hbm [shape: bf16[2,8,256], index: 0, kind: input, shape index: {}]
  %s1 = inlined_call_operand.hbm [shape: bf16[2,16,256], index: 1, kind: input, shape index: {}]
  %s2 = inlined_call_operand.hbm [shape: f32[2,8,8], index: 2, kind: output, shape index: {0}]
  %s3 = inlined_call_operand.vmem [shape: f32[2,8,1], index: 3, kind: output, shape index: {1}]
  %s4 = inlined_call_operand.hbm [shape: f32[2,16,16], index: 4, kind: output, shape index: {2}]
  %5 = xla_tuple %s2, %s3, %s4
  %s6 = sld [smem:[#allocation0]]
  $region69: #{tpu_custom_call.1} parent=0
    _
  %s8 = ssub.s32 1, %s6
  %s9 = scalar_select 0, %s8, %s6
  $region1: #{tpu_custom_call.1} parent=0
    #allocation2 [shape = 'u8[8192]{0}', space=vmem, size = 0x2000, scoped, tag = 'input window, operand 0']
    #allocation3 [shape = 's32[2]{0}', space=sflag, size = 0x8, scoped, tag = 'scoped memory for tpu_custom_call.1']
    #allocation4 [shape = 's32[2]{0}', space=sflag, size = 0x8, scoped, tag = 'scoped memory for tpu_custom_call.1']
    #allocation5 [shape = 'u8[16384]{0}', space=vmem, size = 0x4000, scoped, tag = 'input window, operand 1']
    #allocation6 [shape = 's32[2]{0}', space=sflag, size = 0x8, scoped, tag = 'scoped memory for tpu_custom_call.1']
    #allocation7 [shape = 'u8[8192]{0}', space=vmem, size = 0x2000, scoped, tag = 'output window, operand 0']
    #allocation8 [shape = 'u8[16384]{0}', space=vmem, size = 0x4000, scoped, tag = 'output window, operand 2']
    #allocation9 [shape = 's32[2]{0}', space=sflag, size = 0x8, scoped, tag = 'scoped memory for tpu_custom_call.1']
    %10 = vsyncpa [#allocation3], 0
    %s11 = scalar_lea.sflag [#allocation3], 1
    %12 = vsyncpa %s11, 0
    %13 = vsyncpa [#allocation6], 0
    %s14 = scalar_lea.sflag [#allocation6], 1
    %15 = vsyncpa %s14, 0
    %16 = vsyncpa [#allocation4], 0
    %s17 = scalar_lea.sflag [#allocation4], 1
    %18 = vsyncpa %s17, 0
    %19 = vsyncpa [#allocation9], 0
    %s20 = scalar_lea.sflag [#allocation9], 1
    %21 = vsyncpa %s20, 0
    loop: start=0, step=1, limit=4
    $region2: #{tpu_custom_call.1} parent=1 // loop_pre_header
      _
    $region3: #{tpu_custom_call.1} parent=1 // loop_header
      %s23 = sphi 0, %s27
      %p24 = scmp.ge.s32.totalorder %s23, 4
      %s30 = sphi 0, %s42
      %s31 = sphi 0, %s38
      %s32 = sphi 0, %s30
      %s33 = sphi 0, %s31
      %s34 = sphi 0, %s32
      %s35 = sphi 0, %s33
      %s47 = sphi 0, %s49
      %s50 = sphi 0, %s47
      %s51 = sphi 0, %s50
      %s67 = sphi 0, %s51
      %s75 = sphi 0, %s77
      %s78 = sphi 0, %s75
      %s79 = sphi 0, %s78
      %s95 = sphi 0, %s79
      %s101 = sphi 0, %s103
      %s104 = sphi 0, %s101
      %s105 = sphi 0, %s104
      %s121 = sphi 0, %s105
      %s127 = sphi 0, %s129
      %s130 = sphi 0, %s127
      %s131 = sphi 0, %s130
      %s147 = sphi 0, %s131
      %s153 = sphi 0, %s155
      %s156 = sphi 0, %s153
      %s157 = sphi 0, %s156
      %s173 = sphi 0, %s157
    $region4: #{tpu_custom_call.1} parent=1 // loop_header_branch
      %26 = sbr.rel (%p24) target = $region8
    $region5: #{tpu_custom_call.1} parent=1 // loop_body
      %s28 = ssub.s32 %s23, 1
      %s29 = ssub.s32 %s23, 2
      %s36 = sadd.s32 1, %s31
      %p37 = scmp.ge.s32.totalorder %s36, 1
      %s38 = scalar_select %p37, 0, %s36
      %s39 = sadd.s32 1, %s30
      %s40 = scalar_select %p37, %s39, %s30
      %p41 = scmp.ge.s32.totalorder %s40, 2
      %s42 = scalar_select %p41, 0, %s40
      %s43 = ssub.s32 %s30, %s42
      %s44 = ssub.s32 %s31, %s38
      %s45 = sor.u32 %s43, %s44
      %p46 = scmp.eq.s32.totalorder %s45, 0
      %s48 = sadd.s32 %s47, 1
      %s49 = scalar_select %p46, %s47, %s48
      %p52 = pneg %p46
      %p53 = scmp.eq.s32.totalorder %s23, 1
      %p54 = por %p52, %p53
      %p55 = scmp.ne.s32.totalorder %s47, %s50
      %p56 = scmp.eq.s32.totalorder %s23, 0
      %p57 = por %p55, %p56
      %p58 = scmp.ne.s32.totalorder %s47, %s50
      %p59 = scmp.eq.s32.totalorder %s28, 1
      %p60 = por %p58, %p59
      %p61 = scmp.ne.s32.totalorder %s50, %s51
      %p62 = scmp.eq.s32.totalorder %s28, 0
      %p63 = por %p61, %p62
      %p64 = scmp.ne.s32.totalorder %s50, %s51
      %p65 = scmp.eq.s32.totalorder %s29, 1
      %p66 = por %p64, %p65
      %p68 = scmp.ne.s32.totalorder %s51, %s67
      %p69 = scmp.eq.s32.totalorder %s29, 0
      %p70 = por %p68, %p69
      %s71 = ssub.s32 %s30, %s42
      %s72 = ssub.s32 %s31, %s38
      %s73 = sor.u32 %s71, %s72
      %p74 = scmp.eq.s32.totalorder %s73, 0
      %s76 = sadd.s32 %s75, 1
      %s77 = scalar_select %p74, %s75, %s76
      %p80 = pneg %p74
      %p81 = scmp.eq.s32.totalorder %s23, 1
      %p82 = por %p80, %p81
      %p83 = scmp.ne.s32.totalorder %s75, %s78
      %p84 = scmp.eq.s32.totalorder %s23, 0
      %p85 = por %p83, %p84
      %p86 = scmp.ne.s32.totalorder %s75, %s78
      %p87 = scmp.eq.s32.totalorder %s28, 1
      %p88 = por %p86, %p87
      %p89 = scmp.ne.s32.totalorder %s78, %s79
      %p90 = scmp.eq.s32.totalorder %s28, 0
      %p91 = por %p89, %p90
      %p92 = scmp.ne.s32.totalorder %s78, %s79
      %p93 = scmp.eq.s32.totalorder %s29, 1
      %p94 = por %p92, %p93
      %p96 = scmp.ne.s32.totalorder %s79, %s95
      %p97 = scmp.eq.s32.totalorder %s29, 0
      %p98 = por %p96, %p97
      %s99 = ssub.s32 %s30, %s42
      %p100 = scmp.eq.s32.totalorder %s99, 0
      %s102 = sadd.s32 %s101, 1
      %s103 = scalar_select %p100, %s101, %s102
      %p106 = pneg %p100
      %p107 = scmp.eq.s32.totalorder %s23, 1
      %p108 = por %p106, %p107
      %p109 = scmp.ne.s32.totalorder %s101, %s104
      %p110 = scmp.eq.s32.totalorder %s23, 0
      %p111 = por %p109, %p110
      %p112 = scmp.ne.s32.totalorder %s101, %s104
      %p113 = scmp.eq.s32.totalorder %s28, 1
      %p114 = por %p112, %p113
      %p115 = scmp.ne.s32.totalorder %s104, %s105
      %p116 = scmp.eq.s32.totalorder %s28, 0
      %p117 = por %p115, %p116
      %p118 = scmp.ne.s32.totalorder %s104, %s105
      %p119 = scmp.eq.s32.totalorder %s29, 1
      %p120 = por %p118, %p119
      %p122 = scmp.ne.s32.totalorder %s105, %s121
      %p123 = scmp.eq.s32.totalorder %s29, 0
      %p124 = por %p122, %p123
      %s125 = ssub.s32 %s30, %s42
      %p126 = scmp.eq.s32.totalorder %s125, 0
      %s128 = sadd.s32 %s127, 1
      %s129 = scalar_select %p126, %s127, %s128
      %p132 = pneg %p126
      %p133 = scmp.eq.s32.totalorder %s23, 1
      %p134 = por %p132, %p133
      %p135 = scmp.ne.s32.totalorder %s127, %s130
      %p136 = scmp.eq.s32.totalorder %s23, 0
      %p137 = por %p135, %p136
      %p138 = scmp.ne.s32.totalorder %s127, %s130
      %p139 = scmp.eq.s32.totalorder %s28, 1
      %p140 = por %p138, %p139
      %p141 = scmp.ne.s32.totalorder %s130, %s131
      %p142 = scmp.eq.s32.totalorder %s28, 0
      %p143 = por %p141, %p142
      %p144 = scmp.ne.s32.totalorder %s130, %s131
      %p145 = scmp.eq.s32.totalorder %s29, 1
      %p146 = por %p144, %p145
      %p148 = scmp.ne.s32.totalorder %s131, %s147
      %p149 = scmp.eq.s32.totalorder %s29, 0
      %p150 = por %p148, %p149
      %s151 = ssub.s32 %s30, %s42
      %p152 = scmp.eq.s32.totalorder %s151, 0
      %s154 = sadd.s32 %s153, 1
      %s155 = scalar_select %p152, %s153, %s154
      %p158 = pneg %p152
      %p159 = scmp.eq.s32.totalorder %s23, 1
      %p160 = por %p158, %p159
      %p161 = scmp.ne.s32.totalorder %s153, %s156
      %p162 = scmp.eq.s32.totalorder %s23, 0
      %p163 = por %p161, %p162
      %p164 = scmp.ne.s32.totalorder %s153, %s156
      %p165 = scmp.eq.s32.totalorder %s28, 1
      %p166 = por %p164, %p165
      %p167 = scmp.ne.s32.totalorder %s156, %s157
      %p168 = scmp.eq.s32.totalorder %s28, 0
      %p169 = por %p167, %p168
      %p170 = scmp.ne.s32.totalorder %s156, %s157
      %p171 = scmp.eq.s32.totalorder %s29, 1
      %p172 = por %p170, %p171
      %p174 = scmp.ne.s32.totalorder %s157, %s173
      %p175 = scmp.eq.s32.totalorder %s29, 0
      %p176 = por %p174, %p175
      %p177 = scmp.le.s32.totalorder 1, %s23
      %p178 = scmp.lt.s32.totalorder %s23, 3
      %p179 = pnand %p177, %p178
      %p180 = pneg %p179
      // Predicated region
      $region9: #{tpu_custom_call.1} parent=5 // pred_check
        _
      $region10: #{tpu_custom_call.1} parent=5 // pred_check_branch
        %182 = sbr.rel (%p179) target = $region12
      $region11: #{tpu_custom_call.1} parent=5 // pred_region
        %s183 = ssub.s32 %s23, 1
      $region12: #{tpu_custom_call.1} parent=5 // pred_fallthru
        _
      %p184 = scmp.lt.s32.totalorder %s23, 2
      // Predicated region
      $region13: #{tpu_custom_call.1} parent=5 // pred_check
        %p185 = pneg %p184
      $region14: #{tpu_custom_call.1} parent=5 // pred_check_branch
        %187 = sbr.rel (%p185) target = $region16
      $region15: #{tpu_custom_call.1} parent=5 // pred_region
        // Predicated region
        $region17: #{tpu_custom_call.1} parent=15 // pred_check
          %p188 = pneg %p57
        $region18: #{tpu_custom_call.1} parent=15 // pred_check_branch
          %190 = sbr.rel (%p188) target = $region20
        $region19: #{tpu_custom_call.1} parent=15 // pred_region
          %s191 = sand.u32 %s47, 1
          %s192 = scalar_lea.sflag [#allocation3], %s191
          %s193 = sand.u32 %s47, 1
          %s194 = smul.addr %s193, 8
          %s195 = scalar_lea.vmem [#allocation2], %s194
          %s196 = smul.u32 2, %s31
          %198 = vsyncadd %s192, 0
          %s199 = smul.addr %s30, 2
          %s200 = sadd.s32 %s196, %s199
          %s201 = smul.addr %s200, 4
          %s202 = scalar_lea.hbm %s0, %s201
          %s204 = sshll.u32 %s202, 4
          %s205 = int_to_ptr.hbm [resolvable:$true] %s204
          %s206 = sshll.u32 %s195, 4
          %s207 = int_to_ptr.vmem [resolvable:$true] %s206
          %209 = dma.hbm_to_vmem [thread:$0]  %s205, 128, %s207, %s192
        $region20: #{tpu_custom_call.1} parent=15 // pred_fallthru
          _
        // Predicated region
        $region21: #{tpu_custom_call.1} parent=15 // pred_check
          %p210 = pneg %p85
        $region22: #{tpu_custom_call.1} parent=15 // pred_check_branch
          %212 = sbr.rel (%p210) target = $region24
        $region23: #{tpu_custom_call.1} parent=15 // pred_region
          %s213 = sand.u32 %s75, 1
          %s214 = scalar_lea.sflag [#allocation6], %s213
          %s215 = sand.u32 %s75, 1
          %s216 = smul.addr %s215, 16
          %s217 = scalar_lea.vmem [#allocation5], %s216
          %s218 = smul.u32 2, %s31
          %220 = vsyncadd %s214, 0
          %s221 = smul.addr %s30, 4
          %s222 = sadd.s32 %s218, %s221
          %s223 = smul.addr %s222, 4
          %s224 = scalar_lea.hbm %s1, %s223
          %s225 = sshll.u32 %s224, 4
          %s226 = int_to_ptr.hbm [resolvable:$true] %s225
          %s227 = sshll.u32 %s217, 4
          %s228 = int_to_ptr.vmem [resolvable:$true] %s227
          %233 = dma.hbm_to_vmem [thread:$0]  %s226, 256, %s228, %s214, 128, 128, 8
        $region24: #{tpu_custom_call.1} parent=15 // pred_fallthru
          _
      $region16: #{tpu_custom_call.1} parent=5 // pred_fallthru
        _
      %p234 = scmp.le.s32.totalorder 1, %s23
      %p235 = scmp.lt.s32.totalorder %s23, 3
      %p236 = pnand %p234, %p235
      %p237 = pneg %p236
      // Predicated region
      $region25: #{tpu_custom_call.1} parent=5 // pred_check
        _
      $region26: #{tpu_custom_call.1} parent=5 // pred_check_branch
        %239 = sbr.rel (%p236) target = $region28
      $region27: #{tpu_custom_call.1} parent=5 // pred_region
        %s240 = ssub.s32 %s23, 1
        %s241 = sand.u32 %s50, 1
        %s242 = scalar_lea.sflag [#allocation3], %s241
        %s243 = sand.u32 %s50, 1
        %s244 = smul.addr %s243, 8
        %s245 = scalar_lea.vmem [#allocation2], %s244
        // Predicated region
        $region29: #{tpu_custom_call.1} parent=27 // pred_check
          %p246 = pneg %p63
        $region30: #{tpu_custom_call.1} parent=27 // pred_check_branch
          %248 = sbr.rel (%p246) target = $region32
        $region31: #{tpu_custom_call.1} parent=27 // pred_region
          %250 = dma.done %s242, 128
        $region32: #{tpu_custom_call.1} parent=27 // pred_fallthru
          _
        %s251 = sand.u32 %s78, 1
        %s252 = scalar_lea.sflag [#allocation6], %s251
        %s253 = sand.u32 %s78, 1
        %s254 = smul.addr %s253, 16
        %s255 = scalar_lea.vmem [#allocation5], %s254
        // Predicated region
        $region33: #{tpu_custom_call.1} parent=27 // pred_check
          %p256 = pneg %p91
        $region34: #{tpu_custom_call.1} parent=27 // pred_check_branch
          %258 = sbr.rel (%p256) target = $region36
        $region35: #{tpu_custom_call.1} parent=27 // pred_region
          %260 = dma.done %s252, 256
        $region36: #{tpu_custom_call.1} parent=27 // pred_fallthru
          _
        %s261 = sand.u32 %s50, 1
        %s262 = scalar_lea.sflag [#allocation3], %s261
        %s263 = sand.u32 %s50, 1
        %s264 = smul.addr %s263, 8
        %s265 = scalar_lea.vmem [#allocation2], %s264
        %p266 = pneg %p63
        %p267 = pneg %p60
        %s268 = sand.u32 %s78, 1
        %s269 = scalar_lea.sflag [#allocation6], %s268
        %s270 = sand.u32 %s78, 1
        %s271 = smul.addr %s270, 16
        %s272 = scalar_lea.vmem [#allocation5], %s271
        %p273 = pneg %p91
        %p274 = pneg %p88
        %p275 = pneg %p117
        %p276 = pneg %p114
        %s277 = sand.u32 %s104, 1
        %s278 = scalar_lea.sflag [#allocation4], %s277
        %s279 = sand.u32 %s104, 1
        %s280 = smul.addr %s279, 8
        %s281 = scalar_lea.vmem [#allocation7], %s280
        %p282 = pneg %p143
        %p283 = pneg %p140
        %p284 = scmp.lt.s32.totalorder %s32, 1
        %s285 = scalar_select %p284, %s32, 1
        %s286 = smul.addr %s285, 8
        %s287 = scalar_lea.vmem %s3, %s286
        %p288 = pneg %p169
        %p289 = pneg %p166
        %s290 = sand.u32 %s156, 1
        %s291 = scalar_lea.sflag [#allocation9], %s290
        %s292 = sand.u32 %s156, 1
        %s293 = smul.addr %s292, 16
        %s294 = scalar_lea.vmem [#allocation8], %s293
        %s295 = smul.u32 2, %s33
        %s296 = smul.u32 2, %s33
        %p297 = scmp.lt.s32.totalorder %s32, 1
        %s298 = scalar_select %p297, %s32, 1
        %s299 = smul.addr %s298, 8
        %s300 = scalar_lea.vmem %s3, %s299
        %p302 = scmp.eq.s32.totalorder %s33, 0
        // Predicated region
        $region37: #{tpu_custom_call.1} parent=27 // pred_check
          %p303 = pneg %p302
        $region38: #{tpu_custom_call.1} parent=27 // pred_check_branch
          %305 = sbr.rel (%p303) target = $region40
        $region39: #{tpu_custom_call.1} parent=27 // pred_region
          %vm306 = vcmask 64512
          %307 = vst.msk [vmem:[%s281] sm:$0xff] %vm306, 0.0
          %vm308 = vcmask 7168
          %309 = vst.msk [vmem:[%s300] sm:$0xff] %vm308, 0.0
          %vm310 = vcmask 130048
          %311 = vst.msk [vmem:[%s294] sm:$0xff] %vm310, 0.0
          %312 = vst.msk [vmem:[%s294 + $0x8] sm:$0xff] %vm310, 0.0
        $region40: #{tpu_custom_call.1} parent=27 // pred_fallthru
          _
        %v313 = vld [vmem:[%s245] sm:$0xff]
        %v314 = vld [vmem:[%s255] sm:$0xff]
        %v315 = vld [vmem:[%s255 + $0x8] sm:$0xff]
        %v316 = vld [vmem:[%s281] sm:$0xff]
        %v318 = vunpack.c.l.b16 %v313
        %v319 = vunpack.c.h.b16 %v313
        %v320 = vpack.c.b16 %v318, %v318
        %v321 = vpack.c.b16 %v319, %v319
        %324 = vmatpush.bf16.xpose.msra.mxu0 0
        %325 = vmatpush.bf16.xpose.msra.mxu0 0
        %326 = vmatpush.bf16.xpose.msra.mxu0 0
        %327 = vmatpush.bf16.xpose.msra.mxu0 0
        %328 = vmatpush.bf16.xpose.msra.mxu0 0
        %329 = vmatpush.bf16.xpose.msra.mxu0 0
        %330 = vmatpush.bf16.xpose.msra.mxu0 0
        %331 = vmatpush.bf16.xpose.msra.mxu0 %v320
        %332 = vmatmul.bf16.gmra.mxu0 %v320
        %v333 = vpop.f32.mrf.mxu0
        %v334 = vadd.f32 0.0, %v333
        %v335 = vpop.f32.mrf.mxu0
        %336 = vdwg.mxu0
        %337 = vmatpush.bf16.xpose.msra.mxu0 0
        %338 = vmatpush.bf16.xpose.msra.mxu0 0
        %339 = vmatpush.bf16.xpose.msra.mxu0 0
        %340 = vmatpush.bf16.xpose.msra.mxu0 0
        %341 = vmatpush.bf16.xpose.msra.mxu0 0
        %342 = vmatpush.bf16.xpose.msra.mxu0 0
        %343 = vmatpush.bf16.xpose.msra.mxu0 0
        %344 = vmatpush.bf16.xpose.msra.mxu0 %v321
        %345 = vmatmul.bf16.gmra.mxu0 %v321
        %v346 = vpop.f32.mrf.mxu0
        %v347 = vadd.f32 %v334, %v346
        %v348 = vpop.f32.mrf.mxu0
        %349 = vdwg.mxu0
        %v350 = vadd.f32 %v316, %v347
        %vm351 = vcmask 64512
        %352 = vst.msk [vmem:[%s281] sm:$0xff] %vm351, %v350
        %v353 = vld [vmem:[%s294] sm:$0xff]
        %v354 = vld [vmem:[%s294 + $0x8] sm:$0xff]
        %v357 = vunpack.c.l.b16 %v314
        %v358 = vunpack.c.h.b16 %v314
        %v359 = vunpack.c.l.b16 %v315
        %v360 = vunpack.c.h.b16 %v315
        %v361 = vpack.c.b16 %v359, %v357
        %v362 = vpack.c.b16 %v360, %v358
        %365 = vmatpush.bf16.xpose.msra.mxu0 0
        %366 = vmatpush.bf16.xpose.msra.mxu0 0
        %367 = vmatpush.bf16.xpose.msra.mxu0 0
        %368 = vmatpush.bf16.xpose.msra.mxu0 0
        %369 = vmatpush.bf16.xpose.msra.mxu0 0
        %370 = vmatpush.bf16.xpose.msra.mxu0 0
        %371 = vmatpush.bf16.xpose.msra.mxu0 0
        %372 = vmatpush.bf16.xpose.msra.mxu0 %v361
        %373 = vmatmul.bf16.gmra.mxu0 %v361
        %v374 = vpop.f32.mrf.mxu0
        %v375 = vadd.f32 0.0, %v374
        %v376 = vpop.f32.mrf.mxu0
        %v377 = vadd.f32 0.0, %v376
        %378 = vdwg.mxu0
        %379 = vmatpush.bf16.xpose.msra.mxu0 0
        %380 = vmatpush.bf16.xpose.msra.mxu0 0
        %381 = vmatpush.bf16.xpose.msra.mxu0 0
        %382 = vmatpush.bf16.xpose.msra.mxu0 0
        %383 = vmatpush.bf16.xpose.msra.mxu0 0
        %384 = vmatpush.bf16.xpose.msra.mxu0 0
        %385 = vmatpush.bf16.xpose.msra.mxu0 0
        %386 = vmatpush.bf16.xpose.msra.mxu0 %v362
        %387 = vmatmul.bf16.gmra.mxu0 %v362
        %v388 = vpop.f32.mrf.mxu0
        %v389 = vadd.f32 %v375, %v388
        %v390 = vpop.f32.mrf.mxu0
        %v391 = vadd.f32 %v377, %v390
        %392 = vdwg.mxu0
        %v393 = vadd.f32 %v353, %v389
        %v394 = vadd.f32 %v354, %v391
        %vm395 = vcmask 130048
        %396 = vst.msk [vmem:[%s294] sm:$0xff] %vm395, %v393
        %397 = vst.msk [vmem:[%s294 + $0x8] sm:$0xff] %vm395, %v394
        %v398 = vld [vmem:[%s300] sm:$0xff]
        %v399 = vunpack.c.l.bf16 %v313
        %v400 = vunpack.c.h.bf16 %v313
        %v401 = vadd.f32 %v399, %v400
        %402 = vadd.xlane.f32.xlu0 %v401
        %v403 = vpop.xlane.xlu0 %402
        %v404 = vadd.f32 %v398, %v403
        %vm405 = vcmask 7168
        %406 = vst.msk [vmem:[%s300] sm:$0xff] %vm405, %v404
        %s407 = sand.u32 %s104, 1
        %s408 = scalar_lea.sflag [#allocation4], %s407
        %s409 = sand.u32 %s104, 1
        %s410 = smul.addr %s409, 8
        %s411 = scalar_lea.vmem [#allocation7], %s410
        %p412 = scmp.lt.s32.totalorder %s32, 1
        %s413 = scalar_select %p412, %s32, 1
        %s414 = smul.addr %s413, 8
        %s415 = scalar_lea.vmem %s3, %s414
        %s416 = sand.u32 %s156, 1
        %s417 = scalar_lea.sflag [#allocation9], %s416
        %s418 = sand.u32 %s156, 1
        %s419 = smul.addr %s418, 16
        %s420 = scalar_lea.vmem [#allocation8], %s419
        // Predicated region
        $region41: #{tpu_custom_call.1} parent=27 // pred_check
          %p421 = pneg %p114
        $region42: #{tpu_custom_call.1} parent=27 // pred_check_branch
          %423 = sbr.rel (%p421) target = $region44
        $region43: #{tpu_custom_call.1} parent=27 // pred_region
          %425 = vsyncadd %s408, 0
          %s426 = smul.addr %s32, 8
          %s427 = scalar_lea.hbm %s2, %s426
          %s429 = sshll.u32 %s411, 4
          %s430 = int_to_ptr.vmem [resolvable:$true] %s429
          %s431 = sshll.u32 %s427, 4
          %s432 = int_to_ptr.hbm [resolvable:$true] %s431
          %434 = dma.vmem_to_hbm [thread:$0]  %s430, 128, %s432, %s408
        $region44: #{tpu_custom_call.1} parent=27 // pred_fallthru
          _
        // Predicated region
        $region45: #{tpu_custom_call.1} parent=27 // pred_check
          %p435 = pneg %p140
        $region46: #{tpu_custom_call.1} parent=27 // pred_check_branch
          %437 = sbr.rel (%p435) target = $region48
        $region47: #{tpu_custom_call.1} parent=27 // pred_region
          _
        $region48: #{tpu_custom_call.1} parent=27 // pred_fallthru
          _
        // Predicated region
        $region49: #{tpu_custom_call.1} parent=27 // pred_check
          %p438 = pneg %p166
        $region50: #{tpu_custom_call.1} parent=27 // pred_check_branch
          %440 = sbr.rel (%p438) target = $region52
        $region51: #{tpu_custom_call.1} parent=27 // pred_region
          %442 = vsyncadd %s417, 0
          %s443 = smul.addr %s32, 2
          %s444 = smul.addr %s443, 8
          %s445 = scalar_lea.hbm %s4, %s444
          %s446 = sshll.u32 %s420, 4
          %s447 = int_to_ptr.vmem [resolvable:$true] %s446
          %s448 = sshll.u32 %s445, 4
          %s449 = int_to_ptr.hbm [resolvable:$true] %s448
          %454 = dma.vmem_to_hbm [thread:$0]  %s447, 256, %s449, %s417, 128, 128, 8
        $region52: #{tpu_custom_call.1} parent=27 // pred_fallthru
          _
      $region28: #{tpu_custom_call.1} parent=5 // pred_fallthru
        _
      %p455 = scmp.le.s32.totalorder 2, %s23
      // Predicated region
      $region53: #{tpu_custom_call.1} parent=5 // pred_check
        %p456 = pneg %p455
      $region54: #{tpu_custom_call.1} parent=5 // pred_check_branch
        %458 = sbr.rel (%p456) target = $region56
      $region55: #{tpu_custom_call.1} parent=5 // pred_region
        %s459 = ssub.s32 %s23, 2
        // Predicated region
        $region57: #{tpu_custom_call.1} parent=55 // pred_check
          %p460 = pneg %p120
        $region58: #{tpu_custom_call.1} parent=55 // pred_check_branch
          %462 = sbr.rel (%p460) target = $region60
        $region59: #{tpu_custom_call.1} parent=55 // pred_region
          %s463 = sand.u32 %s105, 1
          %s464 = scalar_lea.sflag [#allocation4], %s463
          %s465 = sand.u32 %s105, 1
          %s466 = smul.addr %s465, 8
          %s467 = scalar_lea.vmem [#allocation7], %s466
          %469 = dma.done %s464, 128
        $region60: #{tpu_custom_call.1} parent=55 // pred_fallthru
          _
        // Predicated region
        $region61: #{tpu_custom_call.1} parent=55 // pred_check
          %p470 = pneg %p146
        $region62: #{tpu_custom_call.1} parent=55 // pred_check_branch
          %472 = sbr.rel (%p470) target = $region64
        $region63: #{tpu_custom_call.1} parent=55 // pred_region
          %p473 = scmp.lt.s32.totalorder %s34, 1
          %s474 = scalar_select %p473, %s34, 1
          %s475 = smul.addr %s474, 8
          %s476 = scalar_lea.vmem %s3, %s475
        $region64: #{tpu_custom_call.1} parent=55 // pred_fallthru
          _
        // Predicated region
        $region65: #{tpu_custom_call.1} parent=55 // pred_check
          %p477 = pneg %p172
        $region66: #{tpu_custom_call.1} parent=55 // pred_check_branch
          %479 = sbr.rel (%p477) target = $region68
        $region67: #{tpu_custom_call.1} parent=55 // pred_region
          %s480 = sand.u32 %s157, 1
          %s481 = scalar_lea.sflag [#allocation9], %s480
          %s482 = sand.u32 %s157, 1
          %s483 = smul.addr %s482, 16
          %s484 = scalar_lea.vmem [#allocation8], %s483
          %486 = dma.done %s481, 256
        $region68: #{tpu_custom_call.1} parent=55 // pred_fallthru
          _
      $region56: #{tpu_custom_call.1} parent=5 // pred_fallthru
        _
    $region6: #{tpu_custom_call.1} parent=1 // loop_footer
      %s27 = sadd.s32 1, %s23
    $region7: #{tpu_custom_call.1} parent=1 // loop_footer_branch
      %22 = sbr.rel target = $region3
    $region8: #{tpu_custom_call.1} parent=1 // loop_exit
      _
    %487 = vsyncpa [#allocation3], 1
    %s488 = scalar_lea.sflag [#allocation3], 1
    %489 = vsyncpa %s488, 1
    %490 = vsyncpa [#allocation6], 1
    %s491 = scalar_lea.sflag [#allocation6], 1
    %492 = vsyncpa %s491, 1
    %493 = vsyncpa [#allocation4], 1
    %s494 = scalar_lea.sflag [#allocation4], 1
    %495 = vsyncpa %s494, 1
    %496 = vsyncpa [#allocation9], 1
    %s497 = scalar_lea.sflag [#allocation9], 1
    %498 = vsyncpa %s497, 1

</llo_original>
